<compile_context>
chip_gen: v7x
topology: tpu7x:2x2x1
jax: 0.10.0
libtpu: 0.0.40
codegen_flags: <defaults>
</compile_context>

<pallas_src>
import jax
import jax.numpy as jnp
from jax.experimental import pallas as pl
from jax.experimental.pallas import tpu as pltpu


def distmult_kernel(e1_ref, rel_ref, wt_ref, out_ref):
    # e1_ref, rel_ref: (B, D) resident; wt_ref: (D, TILE_E) streamed entity tile;
    # out_ref: (B, TILE_E).
    # h is tiny (B*D elements); recomputing it per tile is essentially free and
    # avoids a per-core scratch-init hazard under megacore ("parallel") sharding.
    h = e1_ref[...] * rel_ref[...]                                    # VPU
    if wt_ref.dtype != jnp.float32:
        h = h.astype(wt_ref.dtype)
    scores = jnp.dot(h, wt_ref[...], preferred_element_type=jnp.float32)  # MXU
    out_ref[...] = jax.nn.sigmoid(scores)                             # EUP, f32


def distmult_forward(e1_emb, rel_emb, emb_e_weight, *, max_tile_e=4096,
                     weight_dtype=None):
    """e1_emb, rel_emb: (B, D) f32; emb_e_weight: (E, D) -> (B, E) f32 scores.

    weight_dtype: optionally stream the entity table in a narrower dtype
    (e.g. jnp.bfloat16) to halve HBM read bytes; accumulation stays f32.
    """
    B, D = e1_emb.shape
    E, D2 = emb_e_weight.shape
    assert D == D2, "embedding_dim mismatch"

    # One-time layout work outside the kernel (weights are static):
    # transpose to (D, E) so the streamed tile's last dim is the entity axis.
    w_t = emb_e_weight.T
    if weight_dtype is not None:
        w_t = w_t.astype(weight_dtype)

    # Entity tile: largest lane multiple <= max_tile_e covering E; pad E up to a
    # whole number of tiles (padded columns are sliced off after the call).
    tile_e = min(max_tile_e, pl.cdiv(E, 128) * 128)
    n_tiles = pl.cdiv(E, tile_e)
    e_pad = n_tiles * tile_e
    if e_pad != E:
        w_t = jnp.pad(w_t, ((0, 0), (0, e_pad - E)))

    # Explicit scoped-VMEM budget: double-buffered weight + output tiles,
    # resident e1/rel, plus headroom.  Never below the default-safe 32 MiB.
    w_itemsize = jnp.dtype(w_t.dtype).itemsize
    vmem_bytes = (2 * tile_e * D * w_itemsize     # double-buffered weight tiles
                  + 2 * B * tile_e * 4            # double-buffered output tiles
                  + 4 * B * D * 4                 # resident e1 / rel
                  + (4 << 20))                    # headroom
    vmem_bytes = int(max(vmem_bytes, 32 << 20))

    out = pl.pallas_call(
        distmult_kernel,
        out_shape=jax.ShapeDtypeStruct((B, e_pad), jnp.float32),
        grid_spec=pltpu.PrefetchScalarGridSpec(
            num_scalar_prefetch=0,
            grid=(n_tiles,),
            in_specs=[
                pl.BlockSpec((B, D), lambda j: (0, 0)),        # e1 emb (resident)
                pl.BlockSpec((B, D), lambda j: (0, 0)),        # rel emb (resident)
                pl.BlockSpec((D, tile_e), lambda j: (0, j)),   # entity tile (stream)
            ],
            out_specs=pl.BlockSpec((B, tile_e), lambda j: (0, j)),
        ),
        compiler_params=pltpu.CompilerParams(
            dimension_semantics=("parallel",),   # shards entity tiles across TCs
            vmem_limit_bytes=vmem_bytes,
        ),
    )(e1_emb, rel_emb, w_t)

    return out[:, :E] if e_pad != E else out


def make_params(key, num_entities, num_relations, embedding_dim):
    """Deterministic xavier-normal-style init; padding_idx=0 rows zeroed."""
    k_e, k_r = jax.random.split(key)
    std_e = (2.0 / (num_entities + embedding_dim)) ** 0.5
    std_r = (2.0 / (num_relations + embedding_dim)) ** 0.5
    emb_e = jax.random.normal(k_e, (num_entities, embedding_dim), jnp.float32) * std_e
    emb_rel = jax.random.normal(k_r, (num_relations, embedding_dim), jnp.float32) * std_r
    emb_e = emb_e.at[0].set(0.0)       # padding_idx=0
    emb_rel = emb_rel.at[0].set(0.0)   # padding_idx=0
    return emb_e, emb_rel


if __name__ == "__main__":
    # Small, module-consistent shapes.
    num_entities = 128
    num_relations = 16
    embedding_dim = 32
    batch = 8

    key = jax.random.PRNGKey(0)
    k_params, k_e1, k_rel = jax.random.split(key, 3)

    emb_e, emb_rel = make_params(k_params, num_entities, num_relations, embedding_dim)

    # Index inputs of shape (batch, 1), as fed to ConvE-family models.
    e1 = jax.random.randint(k_e1, (batch, 1), 0, num_entities, dtype=jnp.int32)
    rel = jax.random.randint(k_rel, (batch, 1), 0, num_relations, dtype=jnp.int32)

    # Embedding lookup + squeeze (glue, plain JAX).
    e1_emb = emb_e[e1[:, 0]]      # (batch, D)
    rel_emb = emb_rel[rel[:, 0]]  # (batch, D)
    # TODO(synk): input dropout omitted (inference-mode identity); BCELoss is
    # training-only and not part of forward.

    pred = distmult_forward(e1_emb, rel_emb, emb_e)
    pred = jax.block_until_ready(pred)

    # Reference check in plain JAX (f32 weight stream keeps tight tolerance).
    ref = jax.nn.sigmoid((e1_emb * rel_emb) @ emb_e.T)
    assert pred.shape == (batch, num_entities)
    assert jnp.allclose(pred, ref, atol=1e-5, rtol=1e-5)

    print("KERNEL_OK")
</pallas_src>

<mosaic_0001>
module attributes {stable_mosaic.version = 11 : i64} {
  func.func @distmult_kernel(%arg0: i32, %arg1: memref<8x32xf32, #tpu.memory_space<vmem>>, %arg2: memref<8x32xf32, #tpu.memory_space<vmem>>, %arg3: memref<32x128xf32, #tpu.memory_space<vmem>>, %arg4: memref<8x128xf32, #tpu.memory_space<vmem>>) attributes {dimension_semantics = [#tpu.dimension_semantics<parallel>], iteration_bounds = array<i64: 1>, scalar_prefetch = 0 : i64, scratch_operands = 0 : i64, tpu.core_type = #tpu.core_type<tc>, window_params = [{pipeline_mode = #tpu.pipeline_mode<synchronous>, transform_indices = @transform_0, window_bounds = array<i64: 8, 32>}, {pipeline_mode = #tpu.pipeline_mode<synchronous>, transform_indices = @transform_1, window_bounds = array<i64: 8, 32>}, {transform_indices = @transform_2, window_bounds = array<i64: 32, 128>}, {transform_indices = @transform_3, window_bounds = array<i64: 8, 128>}]} {
    %c0 = arith.constant 0 : index
    %c0_0 = arith.constant 0 : index
    %0 = vector.load %arg1[%c0, %c0_0] : memref<8x32xf32, #tpu.memory_space<vmem>>, vector<8x32xf32>
    %c0_1 = arith.constant 0 : index
    %c0_2 = arith.constant 0 : index
    %1 = vector.load %arg2[%c0_1, %c0_2] : memref<8x32xf32, #tpu.memory_space<vmem>>, vector<8x32xf32>
    %2 = arith.mulf %0, %1 : vector<8x32xf32>
    %c0_3 = arith.constant 0 : index
    %c0_4 = arith.constant 0 : index
    %3 = vector.load %arg3[%c0_3, %c0_4] : memref<32x128xf32, #tpu.memory_space<vmem>>, vector<32x128xf32>
    %cst = arith.constant dense<0.000000e+00> : vector<8x128xf32>
    %4 = tpu.matmul %2, %3, %cst {dimension_numbers = #tpu.dot_dimension_numbers<[1], [0], [0], [1], [0, 0, 1, 1], [], []>} : vector<8x32xf32>, vector<32x128xf32>, vector<8x128xf32> -> vector<8x128xf32>
    %5 = arith.negf %4 : vector<8x128xf32>
    %6 = math.exp %5 : vector<8x128xf32>
    %cst_5 = arith.constant 1.000000e+00 : f32
    %7 = vector.broadcast %cst_5 : f32 to vector<8x128xf32>
    %8 = arith.addf %7, %6 : vector<8x128xf32>
    %9 = arith.divf %7, %8 : vector<8x128xf32>
    %c0_6 = arith.constant 0 : index
    %c0_7 = arith.constant 0 : index
    %10 = vector.load %arg4[%c0_6, %c0_7] : memref<8x128xf32, #tpu.memory_space<vmem>>, vector<8x128xf32>
    tpu.vector_store %arg4[%c0_6, %c0_7], %9 {strides = array<i32>} : memref<8x128xf32, #tpu.memory_space<vmem>>, vector<8x128xf32>,
    return
  }
  func.func @transform_0(%arg0: i32) -> (i32, i32) {
    %c0_i32 = arith.constant 0 : i32
    %c0_i32_0 = arith.constant 0 : i32
    %c0_i32_1 = arith.constant 0 : i32
    return %c0_i32, %c0_i32_0 : i32, i32
  }
  func.func @transform_1(%arg0: i32) -> (i32, i32) {
    %c0_i32 = arith.constant 0 : i32
    %c0_i32_0 = arith.constant 0 : i32
    %c0_i32_1 = arith.constant 0 : i32
    return %c0_i32, %c0_i32_0 : i32, i32
  }
  func.func @transform_2(%arg0: i32) -> (i32, i32) {
    %c0_i32 = arith.constant 0 : i32
    %c0_i32_0 = arith.constant 0 : i32
    return %c0_i32, %arg0 : i32, i32
  }
  func.func @transform_3(%arg0: i32) -> (i32, i32) {
    %c0_i32 = arith.constant 0 : i32
    %c0_i32_0 = arith.constant 0 : i32
    return %c0_i32, %arg0 : i32, i32
  }
}

</mosaic_0001>

<llo_original>
// kernel: tpu_custom_call.1
$region0: #{tpu_custom_call.1}
  #allocation0 [shape = 'u32[]', space=smem, size = 0x4, offset = 0x4, fixed_abs, tag = 'smem constant byte address 0x4 - core index']
  #allocation1 [shape = 'u32[144,128]{1,0:T(1,128)}', space=vmem, size = 0x12000, scoped, tag = 'internal scratch']
  %s0 = inlined_call_operand.hbm [shape: f32[8,32], index: 0, kind: input, shape index: {}]
  %s1 = inlined_call_operand.hbm [shape: f32[8,32], index: 1, kind: input, shape index: {}]
  %s2 = inlined_call_operand.hbm [shape: f32[32,128], index: 2, kind: input, shape index: {}]
  %s3 = inlined_call_operand.hbm [shape: f32[8,128], index: 3, kind: output, shape index: {}]
  %s4 = sld [smem:[#allocation0]]
  $region34: #{tpu_custom_call.1} parent=0
    _
  %s6 = ssub.s32 1, %s4
  %s7 = scalar_select 0, %s6, %s4
  $region1: #{tpu_custom_call.1} parent=0
    #allocation2 [shape = 'u8[4096]{0}', space=vmem, size = 0x1000, scoped, tag = 'input window, operand 0, single buffered']
    #allocation3 [shape = 's32[1]{0}', space=sflag, size = 0x4, scoped, tag = 'scoped memory for tpu_custom_call.1']
    #allocation4 [shape = 's32[1]{0}', space=sflag, size = 0x4, scoped, tag = 'scoped memory for tpu_custom_call.1']
    #allocation5 [shape = 'u8[4096]{0}', space=vmem, size = 0x1000, scoped, tag = 'input window, operand 1, single buffered']
    #allocation6 [shape = 's32[1]{0}', space=sflag, size = 0x4, scoped, tag = 'scoped memory for tpu_custom_call.1']
    #allocation7 [shape = 'u8[16384]{0}', space=vmem, size = 0x4000, scoped, tag = 'input window, operand 2, single buffered']
    #allocation8 [shape = 'u8[4096]{0}', space=vmem, size = 0x1000, scoped, tag = 'output window, operand 0, single buffered']
    %8 = vsyncpa [#allocation3], 0
    %9 = vsyncpa [#allocation6], 0
    %10 = vsyncpa [#allocation4], 0
    // Predicated region
    $region2: #{tpu_custom_call.1} parent=1 // pred_check
      _
    $region3: #{tpu_custom_call.1} parent=1 // pred_check_branch
      %12 = sbr.rel (0) target = $region5
    $region4: #{tpu_custom_call.1} parent=1 // pred_region
      %s14 = ssub.s32 128, 128
      %15 = vsyncadd [#allocation3], %s14
      %s17 = sshll.u32 [#allocation2], 4
      %s18 = int_to_ptr.vmem [resolvable:$true] %s17
      %20 = dma.hbm_to_vmem [thread:$0]  %s0, 128, %s18, [#allocation3]
    $region5: #{tpu_custom_call.1} parent=1 // pred_fallthru
      _
    // Predicated region
    $region6: #{tpu_custom_call.1} parent=1 // pred_check
      _
    $region7: #{tpu_custom_call.1} parent=1 // pred_check_branch
      %22 = sbr.rel (0) target = $region9
    $region8: #{tpu_custom_call.1} parent=1 // pred_region
      %s24 = ssub.s32 128, 128
      %25 = vsyncadd [#allocation6], %s24
      %s27 = sshll.u32 [#allocation5], 4
      %s28 = int_to_ptr.vmem [resolvable:$true] %s27
      %30 = dma.hbm_to_vmem [thread:$0]  %s1, 128, %s28, [#allocation6]
    $region9: #{tpu_custom_call.1} parent=1 // pred_fallthru
      _
    // Predicated region
    $region10: #{tpu_custom_call.1} parent=1 // pred_check
      _
    $region11: #{tpu_custom_call.1} parent=1 // pred_check_branch
      %32 = sbr.rel (0) target = $region13
    $region12: #{tpu_custom_call.1} parent=1 // pred_region
      %s34 = ssub.s32 512, 512
      %35 = vsyncadd [#allocation6], %s34
      %s36 = sshll.u32 [#allocation7], 4
      %s37 = int_to_ptr.vmem [resolvable:$true] %s36
      %42 = dma.hbm_to_vmem [thread:$0]  %s2, 512, %s37, [#allocation6], 128, 128, 8
    $region13: #{tpu_custom_call.1} parent=1 // pred_fallthru
      _
    // Predicated region
    $region14: #{tpu_custom_call.1} parent=1 // pred_check
      _
    $region15: #{tpu_custom_call.1} parent=1 // pred_check_branch
      %44 = sbr.rel (0) target = $region17
    $region16: #{tpu_custom_call.1} parent=1 // pred_region
      %45 = dma.done [#allocation3], 128
    $region17: #{tpu_custom_call.1} parent=1 // pred_fallthru
      _
    // Predicated region
    $region18: #{tpu_custom_call.1} parent=1 // pred_check
      _
    $region19: #{tpu_custom_call.1} parent=1 // pred_check_branch
      %47 = sbr.rel (0) target = $region21
    $region20: #{tpu_custom_call.1} parent=1 // pred_region
      %48 = dma.done [#allocation6], 128
    $region21: #{tpu_custom_call.1} parent=1 // pred_fallthru
      _
    // Predicated region
    $region22: #{tpu_custom_call.1} parent=1 // pred_check
      _
    $region23: #{tpu_custom_call.1} parent=1 // pred_check_branch
      %50 = sbr.rel (0) target = $region25
    $region24: #{tpu_custom_call.1} parent=1 // pred_region
      %51 = dma.done [#allocation6], 512
    $region25: #{tpu_custom_call.1} parent=1 // pred_fallthru
      _
    %v52 = vld [vmem:[#allocation2] sm:$0xff]
    %v53 = vld [vmem:[#allocation5] sm:$0xff]
    %v54 = vmul.f32 %v52, %v53
    %v55 = vld [vmem:[#allocation7] sm:$0xff]
    %v56 = vld [vmem:[#allocation7 + $0x8] sm:$0xff]
    %v57 = vld [vmem:[#allocation7 + $0x10] sm:$0xff]
    %v58 = vld [vmem:[#allocation7 + $0x18] sm:$0xff]
    %vm59 = vcmask 261120
    %v61 = vsel %vm59, %v54, 0
    %63 = vmatprep.subr.mxu0 0.0
    %64 = vmatpush1.msra.mxu0 %v55
    %65 = vmatprep.subr.mxu0 0.0
    %66 = vmatpush1.msra.mxu0 %v56
    %67 = vmatprep.subr.mxu0 0.0
    %68 = vmatpush1.msra.mxu0 %v57
    %69 = vmatprep.subr.mxu0 0.0
    %70 = vmatpush1.msra.mxu0 %v58
    %71 = vmatprep.subr.mxu0 0.0
    %72 = vmatpush1.msra.mxu0 0.0
    %73 = vmatprep.subr.mxu0 0.0
    %74 = vmatpush1.msra.mxu0 0.0
    %75 = vmatprep.subr.mxu0 0.0
    %76 = vmatpush1.msra.mxu0 0.0
    %77 = vmatprep.subr.mxu0 0.0
    %78 = vmatpush1.msra.mxu0 0.0
    %79 = vmatprep.subr.mxu0 0.0
    %80 = vmatpush1.msra.mxu0 0.0
    %81 = vmatprep.subr.mxu0 0.0
    %82 = vmatpush1.msra.mxu0 0.0
    %83 = vmatprep.subr.mxu0 0.0
    %84 = vmatpush1.msra.mxu0 0.0
    %85 = vmatprep.subr.mxu0 0.0
    %86 = vmatpush1.msra.mxu0 0.0
    %87 = vmatprep.subr.mxu0 0.0
    %88 = vmatpush1.msra.mxu0 0.0
    %89 = vmatprep.subr.mxu0 0.0
    %90 = vmatpush1.msra.mxu0 0.0
    %91 = vmatprep.subr.mxu0 0.0
    %92 = vmatpush1.msra.mxu0 0.0
    %93 = vmatprep.subr.mxu0 0.0
    %94 = vmatpush1.msra.mxu0 0.0
    %95 = vmatprep.subr.mxu0 0.0
    %96 = vmatpush1.msra.mxu0 0.0
    %97 = vmatprep.subr.mxu0 0.0
    %98 = vmatpush1.msra.mxu0 0.0
    %99 = vmatprep.subr.mxu0 0.0
    %100 = vmatpush1.msra.mxu0 0.0
    %101 = vmatprep.subr.mxu0 0.0
    %102 = vmatpush1.msra.mxu0 0.0
    %103 = vmatprep.subr.mxu0 0.0
    %104 = vmatpush1.msra.mxu0 0.0
    %105 = vmatprep.subr.mxu0 0.0
    %106 = vmatpush1.msra.mxu0 0.0
    %107 = vmatprep.subr.mxu0 0.0
    %108 = vmatpush1.msra.mxu0 0.0
    %109 = vmatprep.subr.mxu0 0.0
    %110 = vmatpush1.msra.mxu0 0.0
    %111 = vmatprep.subr.mxu0 0.0
    %112 = vmatpush1.msra.mxu0 0.0
    %113 = vmatprep.subr.mxu0 0.0
    %114 = vmatpush1.msra.mxu0 0.0
    %115 = vmatprep.subr.mxu0 0.0
    %116 = vmatpush1.msra.mxu0 0.0
    %117 = vmatprep.subr.mxu0 0.0
    %118 = vmatpush1.msra.mxu0 0.0
    %119 = vmatprep.subr.mxu0 0.0
    %120 = vmatpush1.msra.mxu0 0.0
    %121 = vmatprep.subr.mxu0 0.0
    %122 = vmatpush1.msra.mxu0 0.0
    %123 = vmatprep.subr.mxu0 0.0
    %124 = vmatpush1.msra.mxu0 0.0
    %125 = vmatprep.subr.mxu0 0.0
    %126 = vmatpush1.msra.mxu0 0.0
    %127 = vmatprep.mubr.f32.mxu0 0.0
    %128 = vmatmul.mubr.f32.gmra.mrb[0].mxu0 %v61
    %v129 = vpop.f32.mrb[0].mxu0
    %v130 = vadd.f32 0.0, %v129
    %v131 = vpop.f32.mrb[0].mxu0
    %132 = vdwg.mxu0
    %v133 = vxor.u32 %v130, 2147483648
    %v134 = vmul.f32 %v133, 1.442695
    %v135 = vpow.pop %v134
    %v136 = vadd.f32 %v135, 1.0
    %v137 = vrcp.pop %v136
    %v138 = vmul.f32 1.0, %v137
    %139 = vst [vmem:[#allocation8] sm:$0xff] %v138
    // Predicated region
    $region26: #{tpu_custom_call.1} parent=1 // pred_check
      _
    $region27: #{tpu_custom_call.1} parent=1 // pred_check_branch
      %141 = sbr.rel (0) target = $region29
    $region28: #{tpu_custom_call.1} parent=1 // pred_region
      %s143 = ssub.s32 128, 128
      %144 = vsyncadd [#allocation4], %s143
      %s146 = sshll.u32 [#allocation8], 4
      %s147 = int_to_ptr.vmem [resolvable:$true] %s146
      %149 = dma.vmem_to_hbm [thread:$0]  %s147, 128, %s3, [#allocation4]
    $region29: #{tpu_custom_call.1} parent=1 // pred_fallthru
      _
    // Predicated region
    $region30: #{tpu_custom_call.1} parent=1 // pred_check
      _
    $region31: #{tpu_custom_call.1} parent=1 // pred_check_branch
      %151 = sbr.rel (0) target = $region33
    $region32: #{tpu_custom_call.1} parent=1 // pred_region
      %152 = dma.done [#allocation4], 128
    $region33: #{tpu_custom_call.1} parent=1 // pred_fallthru
      _
    %153 = vsyncpa [#allocation3], 1
    %154 = vsyncpa [#allocation6], 1
    %155 = vsyncpa [#allocation4], 1

</llo_original>
